<compile_context>
chip_gen: v7x
topology: tpu7x:2x2x1
jax: 0.10.0
libtpu: 0.0.40
codegen_flags: <defaults>
</compile_context>

<pallas_src>
import functools

import jax
import jax.numpy as jnp
from jax.experimental import pallas as pl
from jax.experimental.pallas import tpu as pltpu


def _mlp_kernel(x_ref, w1_ref, b1_ref, w23_ref, b23_ref, w4_ref, b4_ref, o_ref):
    """Whole fused MLP for one batch tile, in transposed (hidden, batch) form."""
    x = x_ref[...]                                              # (tb, D)
    # Layer 1 on the MXU: W1 (16, D) contracted with x (tb, D) over D -> (16, tb)
    h1 = jnp.tanh(
        jax.lax.dot_general(
            w1_ref[...], x, (((1,), (1,)), ((), ())),
            preferred_element_type=jnp.float32)
        + b1_ref[...])                                          # b1 (16, 1)
    # Fused layers 2+3 on the MXU: (8, 16) @ (16, tb) -> (8, tb), then tanh.
    h3 = jnp.tanh(
        jnp.dot(w23_ref[...], h1, preferred_element_type=jnp.float32)
        + b23_ref[...])                                         # b23 (8, 1)
    # Layer 4 on the VPU + sublane sum (XLU) instead of a 1-row MXU matmul:
    # (8, 1) * (8, tb) -> sum over hidden axis -> (1, tb), then + b4 (1, 1).
    y = jnp.sum(w4_ref[...] * h3, axis=0, keepdims=True) + b4_ref[...]
    # Lane-dense store: one (1, tb) row per grid step.
    o_ref[...] = y.astype(o_ref.dtype)


def _round_up(n, m):
    return ((n + m - 1) // m) * m


@functools.partial(jax.jit, static_argnames=("block_batch",))
def value_network_forward(x, params, *, block_batch=1024):
    """x: (B, input_size) float32. params: dict of PyTorch-layout weights."""
    B, D = x.shape
    if block_batch % 128 != 0:
        raise ValueError("block_batch must be a multiple of 128")

    # --- Batch-tile selection -------------------------------------------
    # Small batches: a single full-array block (one grid step, no boundary
    # handling needed). Large batches: multiples of 128 so output stores are
    # lane-dense; size the double-buffered x tile against an 8 MiB budget
    # (safe for v5e's 16 MiB default scoped VMEM and v7x's 64 MiB physical),
    # and keep >= 2 grid steps so v7x's two TensorCores both get work.
    if B <= 256:
        tb = B
    else:
        x_vmem_budget = 8 * 1024 * 1024                   # bytes, 2 x-buffers
        tb_vmem = max(128, (x_vmem_budget // (2 * 4 * D)) // 128 * 128)
        tb_two_steps = max(128, _round_up(pl.cdiv(B, 2), 128))
        tb = min(block_batch, tb_vmem, tb_two_steps)
    num_tiles = pl.cdiv(B, tb)

    # --- Parameter prep (PyTorch layout, tiny -> done once per call) -----
    hi = jax.lax.Precision.HIGHEST
    w1 = params["w1"]                       # (16, D)
    b1 = params["b1"][:, None]              # (16, 1)  column, broadcasts on lanes
    # Offline fusion of the activation-free middle layers (reassociation only):
    w23 = jnp.dot(params["w3"], params["w2"], precision=hi)              # (8, 16)
    b23 = (jnp.dot(params["w3"], params["b2"], precision=hi)
           + params["b3"])[:, None]                                      # (8, 1)
    w4 = params["w4"].T                     # (8, 1)  column for the VPU multiply
    b4 = params["b4"][:, None]              # (1, 1)

    # Full-array, VMEM-resident blocks with constant index_map (DMA'd once).
    full = lambda a: pl.BlockSpec(a.shape, lambda i, _nd=a.ndim: (0,) * _nd)

    out = pl.pallas_call(
        _mlp_kernel,
        out_shape=jax.ShapeDtypeStruct((1, B), x.dtype),
        grid_spec=pltpu.PrefetchScalarGridSpec(
            num_scalar_prefetch=0,
            grid=(num_tiles,),
            in_specs=[
                pl.BlockSpec((tb, D), lambda i: (i, 0)),   # x, tiled over batch
                full(w1), full(b1),
                full(w23), full(b23),
                full(w4), full(b4),
            ],
            out_specs=pl.BlockSpec((1, tb), lambda i: (0, i)),  # lane-dense slab
        ),
        compiler_params=pltpu.CompilerParams(
            dimension_semantics=("parallel",),
            vmem_limit_bytes=32 * 1024 * 1024,   # explicit guard (v5e/v6e/v7x safe)
        ),
    )(x, w1, b1, w23, b23, w4, b4)

    return out[0, :, None]                  # (B, 1)


def init_params(key, input_size):
    """Deterministic synthetic parameters with PyTorch nn.Linear shapes."""
    dims = [(16, input_size), (24, 16), (8, 24), (1, 8)]
    names = ["1", "2", "3", "4"]
    params = {}
    for name, (out_d, in_d) in zip(names, dims):
        key, kw, kb = jax.random.split(key, 3)
        bound = 1.0 / jnp.sqrt(in_d)
        params[f"w{name}"] = jax.random.uniform(
            kw, (out_d, in_d), jnp.float32, -bound, bound)
        params[f"b{name}"] = jax.random.uniform(
            kb, (out_d,), jnp.float32, -bound, bound)
    return params


def reference_forward(x, p):
    """Pure-JAX reference mirroring the PyTorch forward (full-f32 dots)."""
    hi = jax.lax.Precision.HIGHEST
    h1 = jnp.tanh(jnp.dot(x, p["w1"].T, precision=hi) + p["b1"])
    h2 = jnp.dot(h1, p["w2"].T, precision=hi) + p["b2"]
    h3 = jnp.tanh(jnp.dot(h2, p["w3"].T, precision=hi) + p["b3"])
    return jnp.dot(h3, p["w4"].T, precision=hi) + p["b4"]


if __name__ == "__main__":
    key = jax.random.PRNGKey(0)
    k_params, k_small, k_large = jax.random.split(key, 3)

    INPUT_SIZE = 32
    params = init_params(k_params, INPUT_SIZE)

    # Tolerance covers the tiny reassociation from the offline W3@W2 fusion
    # and MXU multi-pass-f32 vs XLA-dot precision differences; real structural
    # bugs (wrong transpose / missing bias) produce errors >> 1e-2.
    ATOL, RTOL = 2e-3, 2e-3

    # Small batch: single full-array block, one grid step.
    x_small = jax.random.normal(k_small, (16, INPUT_SIZE), jnp.float32)
    y_small = jax.block_until_ready(value_network_forward(x_small, params))
    ref_small = reference_forward(x_small, params)
    assert y_small.shape == (16, 1), y_small.shape
    assert jnp.allclose(y_small, ref_small, atol=ATOL, rtol=RTOL), (
        f"small max abs err {jnp.max(jnp.abs(y_small - ref_small))}")

    # Larger, non-divisible batch: exercises the 512-row tile, the 2-step
    # "parallel" grid, and Pallas boundary-block handling (no wrapper pad).
    x_large = jax.random.normal(k_large, (1000, INPUT_SIZE), jnp.float32)
    y_large = jax.block_until_ready(value_network_forward(x_large, params))
    ref_large = reference_forward(x_large, params)
    assert y_large.shape == (1000, 1), y_large.shape
    assert jnp.allclose(y_large, ref_large, atol=ATOL, rtol=RTOL), (
        f"large max abs err {jnp.max(jnp.abs(y_large - ref_large))}")

    print("KERNEL_OK")
</pallas_src>

<mosaic_0001>
module attributes {stable_mosaic.version = 11 : i64} {
  func.func @_mlp_kernel(%arg0: i32, %arg1: memref<16x32xf32, #tpu.memory_space<vmem>>, %arg2: memref<16x32xf32, #tpu.memory_space<vmem>>, %arg3: memref<16x1xf32, #tpu.memory_space<vmem>>, %arg4: memref<8x16xf32, #tpu.memory_space<vmem>>, %arg5: memref<8x1xf32, #tpu.memory_space<vmem>>, %arg6: memref<8x1xf32, #tpu.memory_space<vmem>>, %arg7: memref<1x1xf32, #tpu.memory_space<vmem>>, %arg8: memref<1x16xf32, #tpu.memory_space<vmem>>) attributes {dimension_semantics = [#tpu.dimension_semantics<parallel>], iteration_bounds = array<i64: 1>, scalar_prefetch = 0 : i64, scratch_operands = 0 : i64, tpu.core_type = #tpu.core_type<tc>, window_params = [{transform_indices = @transform_0, window_bounds = array<i64: 16, 32>}, {pipeline_mode = #tpu.pipeline_mode<synchronous>, transform_indices = @transform_1, window_bounds = array<i64: 16, 32>}, {pipeline_mode = #tpu.pipeline_mode<synchronous>, transform_indices = @transform_2, window_bounds = array<i64: 16, 1>}, {pipeline_mode = #tpu.pipeline_mode<synchronous>, transform_indices = @transform_3, window_bounds = array<i64: 8, 16>}, {pipeline_mode = #tpu.pipeline_mode<synchronous>, transform_indices = @transform_4, window_bounds = array<i64: 8, 1>}, {pipeline_mode = #tpu.pipeline_mode<synchronous>, transform_indices = @transform_5, window_bounds = array<i64: 8, 1>}, {pipeline_mode = #tpu.pipeline_mode<synchronous>, transform_indices = @transform_6, window_bounds = array<i64: 1, 1>}, {transform_indices = @transform_7, window_bounds = array<i64: 1, 16>}]} {
    %c0 = arith.constant 0 : index
    %c0_0 = arith.constant 0 : index
    %0 = vector.load %arg1[%c0, %c0_0] : memref<16x32xf32, #tpu.memory_space<vmem>>, vector<16x32xf32>
    %c0_1 = arith.constant 0 : index
    %c0_2 = arith.constant 0 : index
    %1 = vector.load %arg2[%c0_1, %c0_2] : memref<16x32xf32, #tpu.memory_space<vmem>>, vector<16x32xf32>
    %cst = arith.constant dense<0.000000e+00> : vector<16x16xf32>
    %2 = tpu.matmul %1, %0, %cst {dimension_numbers = #tpu.dot_dimension_numbers<[1], [1], [0], [0], [0, 0, 1, 0], [], []>} : vector<16x32xf32>, vector<16x32xf32>, vector<16x16xf32> -> vector<16x16xf32>
    %c0_3 = arith.constant 0 : index
    %c0_4 = arith.constant 0 : index
    %3 = vector.load %arg3[%c0_3, %c0_4] : memref<16x1xf32, #tpu.memory_space<vmem>>, vector<16x1xf32>
    %4 = vector.broadcast %3 : vector<16x1xf32> to vector<16x16xf32>
    %5 = arith.addf %2, %4 : vector<16x16xf32>
    %6 = math.tanh %5 : vector<16x16xf32>
    %c0_5 = arith.constant 0 : index
    %c0_6 = arith.constant 0 : index
    %7 = vector.load %arg4[%c0_5, %c0_6] : memref<8x16xf32, #tpu.memory_space<vmem>>, vector<8x16xf32>
    %cst_7 = arith.constant dense<0.000000e+00> : vector<8x16xf32>
    %8 = tpu.matmul %7, %6, %cst_7 {dimension_numbers = #tpu.dot_dimension_numbers<[1], [0], [0], [1], [0, 0, 1, 1], [], []>} : vector<8x16xf32>, vector<16x16xf32>, vector<8x16xf32> -> vector<8x16xf32>
    %c0_8 = arith.constant 0 : index
    %c0_9 = arith.constant 0 : index
    %9 = vector.load %arg5[%c0_8, %c0_9] : memref<8x1xf32, #tpu.memory_space<vmem>>, vector<8x1xf32>
    %10 = vector.broadcast %9 : vector<8x1xf32> to vector<8x16xf32>
    %11 = arith.addf %8, %10 : vector<8x16xf32>
    %12 = math.tanh %11 : vector<8x16xf32>
    %c0_10 = arith.constant 0 : index
    %c0_11 = arith.constant 0 : index
    %13 = vector.load %arg6[%c0_10, %c0_11] : memref<8x1xf32, #tpu.memory_space<vmem>>, vector<8x1xf32>
    %14 = vector.broadcast %13 : vector<8x1xf32> to vector<8x16xf32>
    %15 = arith.mulf %14, %12 : vector<8x16xf32>
    %cst_12 = arith.constant dense<0.000000e+00> : vector<16xf32>
    %16 = vector.multi_reduction <add>, %15, %cst_12 [0] : vector<8x16xf32> to vector<16xf32>
    %17 = vector.shape_cast %16 : vector<16xf32> to vector<1x16xf32>
    %c0_13 = arith.constant 0 : index
    %c0_14 = arith.constant 0 : index
    %18 = vector.load %arg7[%c0_13, %c0_14] : memref<1x1xf32, #tpu.memory_space<vmem>>, vector<1x1xf32>
    %19 = vector.broadcast %18 : vector<1x1xf32> to vector<1x16xf32>
    %20 = arith.addf %17, %19 : vector<1x16xf32>
    %c0_15 = arith.constant 0 : index
    %c0_16 = arith.constant 0 : index
    %21 = vector.load %arg8[%c0_15, %c0_16] : memref<1x16xf32, #tpu.memory_space<vmem>>, vector<1x16xf32>
    tpu.vector_store %arg8[%c0_15, %c0_16], %20 {strides = array<i32>} : memref<1x16xf32, #tpu.memory_space<vmem>>, vector<1x16xf32>,
    return
  }
  func.func @transform_0(%arg0: i32) -> (i32, i32) {
    %c0_i32 = arith.constant 0 : i32
    %c0_i32_0 = arith.constant 0 : i32
    return %arg0, %c0_i32 : i32, i32
  }
  func.func @transform_1(%arg0: i32) -> (i32, i32) {
    %c0_i32 = arith.constant 0 : i32
    %c0_i32_0 = arith.constant 0 : i32
    %c0_i32_1 = arith.constant 0 : i32
    return %c0_i32, %c0_i32_0 : i32, i32
  }
  func.func @transform_2(%arg0: i32) -> (i32, i32) {
    %c0_i32 = arith.constant 0 : i32
    %c0_i32_0 = arith.constant 0 : i32
    %c0_i32_1 = arith.constant 0 : i32
    return %c0_i32, %c0_i32_0 : i32, i32
  }
  func.func @transform_3(%arg0: i32) -> (i32, i32) {
    %c0_i32 = arith.constant 0 : i32
    %c0_i32_0 = arith.constant 0 : i32
    %c0_i32_1 = arith.constant 0 : i32
    return %c0_i32, %c0_i32_0 : i32, i32
  }
  func.func @transform_4(%arg0: i32) -> (i32, i32) {
    %c0_i32 = arith.constant 0 : i32
    %c0_i32_0 = arith.constant 0 : i32
    %c0_i32_1 = arith.constant 0 : i32
    return %c0_i32, %c0_i32_0 : i32, i32
  }
  func.func @transform_5(%arg0: i32) -> (i32, i32) {
    %c0_i32 = arith.constant 0 : i32
    %c0_i32_0 = arith.constant 0 : i32
    %c0_i32_1 = arith.constant 0 : i32
    return %c0_i32, %c0_i32_0 : i32, i32
  }
  func.func @transform_6(%arg0: i32) -> (i32, i32) {
    %c0_i32 = arith.constant 0 : i32
    %c0_i32_0 = arith.constant 0 : i32
    %c0_i32_1 = arith.constant 0 : i32
    return %c0_i32, %c0_i32_0 : i32, i32
  }
  func.func @transform_7(%arg0: i32) -> (i32, i32) {
    %c0_i32 = arith.constant 0 : i32
    %c0_i32_0 = arith.constant 0 : i32
    return %c0_i32, %arg0 : i32, i32
  }
}

</mosaic_0001>

<llo_original>
// kernel: value_network_forward.1
$region0: #{value_network_forward.1}
  #allocation0 [shape = 'u32[]', space=smem, size = 0x4, offset = 0x4, fixed_abs, tag = 'smem constant byte address 0x4 - core index']
  #allocation1 [shape = 'u32[144,128]{1,0:T(1,128)}', space=vmem, size = 0x12000, scoped, tag = 'internal scratch']
  #allocation2 [shape = 'f32[1,1]{1,0:T(1,128)S(1)}', space=vmem, size = 0x200, scoped, tag = 'scoped memory for value_network_forward.1']
  %s0 = inlined_call_operand.vmem [shape: f32[16,32], index: 0, kind: input, shape index: {}]
  %s1 = inlined_call_operand.vmem [shape: f32[16,32], index: 1, kind: input, shape index: {}]
  %s2 = inlined_call_operand.vmem [shape: f32[16,1], index: 2, kind: input, shape index: {}]
  %s3 = inlined_call_operand.vmem [shape: f32[8,16], index: 3, kind: input, shape index: {}]
  %s4 = inlined_call_operand.vmem [shape: f32[8,1], index: 4, kind: input, shape index: {}]
  %s5 = inlined_call_operand.vmem [shape: f32[8,1], index: 5, kind: input, shape index: {}]
  %s6 = inlined_call_operand.<no memory space> [shape: f32[1,1], index: 6, kind: input, shape index: {}]
  %s7 = inlined_call_operand.hbm [shape: f32[1,16], index: 7, kind: output, shape index: {}]
  %s8 = sld [smem:[#allocation0]]
  $region38: #{value_network_forward.1} parent=0
    _
  %s10 = ssub.s32 1, %s8
  %s11 = scalar_select 0, %s10, %s8
  %v12 = vstv %s6
  %13 = vst [vmem:[#allocation2] sm:$0x1] %v12
  $region1: #{value_network_forward.1} parent=0
    #allocation3 [shape = 'u8[512]{0}', space=vmem, size = 0x400, scoped, tag = 'output window, operand 0, single buffered']
    #allocation4 [shape = 's32[1]{0}', space=sflag, size = 0x4, scoped, tag = 'scoped memory for value_network_forward.1']
    %14 = vsyncpa [#allocation4], 0
    // Predicated region
    $region2: #{value_network_forward.1} parent=1 // pred_check
      _
    $region3: #{value_network_forward.1} parent=1 // pred_check_branch
      %16 = sbr.rel (0) target = $region5
    $region4: #{value_network_forward.1} parent=1 // pred_region
      _
    $region5: #{value_network_forward.1} parent=1 // pred_fallthru
      _
    // Predicated region
    $region6: #{value_network_forward.1} parent=1 // pred_check
      _
    $region7: #{value_network_forward.1} parent=1 // pred_check_branch
      %18 = sbr.rel (0) target = $region9
    $region8: #{value_network_forward.1} parent=1 // pred_region
      _
    $region9: #{value_network_forward.1} parent=1 // pred_fallthru
      _
    // Predicated region
    $region10: #{value_network_forward.1} parent=1 // pred_check
      _
    $region11: #{value_network_forward.1} parent=1 // pred_check_branch
      %20 = sbr.rel (0) target = $region13
    $region12: #{value_network_forward.1} parent=1 // pred_region
      _
    $region13: #{value_network_forward.1} parent=1 // pred_fallthru
      _
    // Predicated region
    $region14: #{value_network_forward.1} parent=1 // pred_check
      _
    $region15: #{value_network_forward.1} parent=1 // pred_check_branch
      %22 = sbr.rel (0) target = $region17
    $region16: #{value_network_forward.1} parent=1 // pred_region
      _
    $region17: #{value_network_forward.1} parent=1 // pred_fallthru
      _
    // Predicated region
    $region18: #{value_network_forward.1} parent=1 // pred_check
      _
    $region19: #{value_network_forward.1} parent=1 // pred_check_branch
      %24 = sbr.rel (0) target = $region21
    $region20: #{value_network_forward.1} parent=1 // pred_region
      _
    $region21: #{value_network_forward.1} parent=1 // pred_fallthru
      _
    // Predicated region
    $region22: #{value_network_forward.1} parent=1 // pred_check
      _
    $region23: #{value_network_forward.1} parent=1 // pred_check_branch
      %26 = sbr.rel (0) target = $region25
    $region24: #{value_network_forward.1} parent=1 // pred_region
      _
    $region25: #{value_network_forward.1} parent=1 // pred_fallthru
      _
    // Predicated region
    $region26: #{value_network_forward.1} parent=1 // pred_check
      _
    $region27: #{value_network_forward.1} parent=1 // pred_check_branch
      %28 = sbr.rel (0) target = $region29
    $region28: #{value_network_forward.1} parent=1 // pred_region
      _
    $region29: #{value_network_forward.1} parent=1 // pred_fallthru
      _
    %v29 = vld [vmem:[%s0] sm:$0xff]
    %v30 = vld [vmem:[%s0 + $0x8] sm:$0xff]
    %v31 = vld [vmem:[%s1] sm:$0xff]
    %v32 = vld [vmem:[%s1 + $0x8] sm:$0xff]
    %v33 = vld [vmem:[%s2] sm:$0xff]
    %v34 = vld [vmem:[%s2 + $0x8] sm:$0xff]
    %36 = vset.pattern.permute.xlu0 0
    %37 = vperm.xlu0 %36, %v33
    %v38 = vpop.permute.xlu0 %37
    %41 = vset.pattern.permute.xlu0 0
    %42 = vperm.xlu0 %41, %v34
    %v43 = vpop.permute.xlu0 %42
    %vm45 = vcmask 261120
    %v47 = vsel %vm45, %v31, 0
    %v50 = vsel %vm45, %v32, 0
    %v53 = vsel %vm45, %v29, 0
    %v56 = vsel %vm45, %v30, 0
    %58 = vmatprep.subr.mxu0 0.0
    %59 = vmatpush1.xpose.msra.mxu0 %v53
    %60 = vmatprep.subr.mxu0 0.0
    %61 = vmatpush1.xpose.msra.mxu0 %v56
    %62 = vmatprep.subr.mxu0 0.0
    %63 = vmatpush1.xpose.msra.mxu0 0.0
    %64 = vmatprep.subr.mxu0 0.0
    %65 = vmatpush1.xpose.msra.mxu0 0.0
    %66 = vmatprep.subr.mxu0 0.0
    %67 = vmatpush1.xpose.msra.mxu0 0.0
    %68 = vmatprep.subr.mxu0 0.0
    %69 = vmatpush1.xpose.msra.mxu0 0.0
    %70 = vmatprep.subr.mxu0 0.0
    %71 = vmatpush1.xpose.msra.mxu0 0.0
    %72 = vmatprep.subr.mxu0 0.0
    %73 = vmatpush1.xpose.msra.mxu0 0.0
    %74 = vmatprep.subr.mxu0 0.0
    %75 = vmatpush1.xpose.msra.mxu0 0.0
    %76 = vmatprep.subr.mxu0 0.0
    %77 = vmatpush1.xpose.msra.mxu0 0.0
    %78 = vmatprep.subr.mxu0 0.0
    %79 = vmatpush1.xpose.msra.mxu0 0.0
    %80 = vmatprep.subr.mxu0 0.0
    %81 = vmatpush1.xpose.msra.mxu0 0.0
    %82 = vmatprep.subr.mxu0 0.0
    %83 = vmatpush1.xpose.msra.mxu0 0.0
    %84 = vmatprep.subr.mxu0 0.0
    %85 = vmatpush1.xpose.msra.mxu0 0.0
    %86 = vmatprep.subr.mxu0 0.0
    %87 = vmatpush1.xpose.msra.mxu0 0.0
    %88 = vmatprep.subr.mxu0 0.0
    %89 = vmatpush1.xpose.msra.mxu0 0.0
    %90 = vmatprep.subr.mxu0 0.0
    %91 = vmatpush1.xpose.msra.mxu0 0.0
    %92 = vmatprep.subr.mxu0 0.0
    %93 = vmatpush1.xpose.msra.mxu0 0.0
    %94 = vmatprep.subr.mxu0 0.0
    %95 = vmatpush1.xpose.msra.mxu0 0.0
    %96 = vmatprep.subr.mxu0 0.0
    %97 = vmatpush1.xpose.msra.mxu0 0.0
    %98 = vmatprep.subr.mxu0 0.0
    %99 = vmatpush1.xpose.msra.mxu0 0.0
    %100 = vmatprep.subr.mxu0 0.0
    %101 = vmatpush1.xpose.msra.mxu0 0.0
    %102 = vmatprep.subr.mxu0 0.0
    %103 = vmatpush1.xpose.msra.mxu0 0.0
    %104 = vmatprep.subr.mxu0 0.0
    %105 = vmatpush1.xpose.msra.mxu0 0.0
    %106 = vmatprep.subr.mxu0 0.0
    %107 = vmatpush1.xpose.msra.mxu0 0.0
    %108 = vmatprep.subr.mxu0 0.0
    %109 = vmatpush1.xpose.msra.mxu0 0.0
    %110 = vmatprep.subr.mxu0 0.0
    %111 = vmatpush1.xpose.msra.mxu0 0.0
    %112 = vmatprep.subr.mxu0 0.0
    %113 = vmatpush1.xpose.msra.mxu0 0.0
    %114 = vmatprep.subr.mxu0 0.0
    %115 = vmatpush1.xpose.msra.mxu0 0.0
    %116 = vmatprep.subr.mxu0 0.0
    %117 = vmatpush1.xpose.msra.mxu0 0.0
    %118 = vmatprep.subr.mxu0 0.0
    %119 = vmatpush1.xpose.msra.mxu0 0.0
    %120 = vmatprep.subr.mxu0 0.0
    %121 = vmatpush1.xpose.msra.mxu0 0.0
    %122 = vmatprep.mubr.f32.mxu0 0.0
    %123 = vmatmul.mubr.f32.gmra.mrb[0].mxu0 %v47
    %v124 = vpop.f32.mrb[0].mxu0
    %v125 = vadd.f32 %v38, %v124
    %v126 = vpop.f32.mrb[0].mxu0
    %127 = vmatprep.mubr.f32.mxu0 0.0
    %128 = vmatmul.mubr.f32.gmra.mrb[0].mxu0 %v50
    %v129 = vpop.f32.mrb[0].mxu0
    %v130 = vadd.f32 %v43, %v129
    %v131 = vpop.f32.mrb[0].mxu0
    %132 = vdwg.mxu0
    %v133 = vtanh.pop %v125
    %v134 = vtanh.pop %v130
    %v135 = vld [vmem:[%s3] sm:$0xff]
    %v136 = vld [vmem:[%s4] sm:$0xff]
    %138 = vset.pattern.permute.xlu0 0
    %139 = vperm.xlu0 %138, %v136
    %v140 = vpop.permute.xlu0 %139
    %vm142 = vcmask 130048
    %v144 = vsel %vm142, %v135, 0
    %146 = vmatprep.subr.mxu0 0.0
    %147 = vmatpush1.msra.mxu0 %v133
    %148 = vmatprep.subr.mxu0 0.0
    %149 = vmatpush1.msra.mxu0 %v134
    %150 = vmatprep.subr.mxu0 0.0
    %151 = vmatpush1.msra.mxu0 0.0
    %152 = vmatprep.subr.mxu0 0.0
    %153 = vmatpush1.msra.mxu0 0.0
    %154 = vmatprep.subr.mxu0 0.0
    %155 = vmatpush1.msra.mxu0 0.0
    %156 = vmatprep.subr.mxu0 0.0
    %157 = vmatpush1.msra.mxu0 0.0
    %158 = vmatprep.subr.mxu0 0.0
    %159 = vmatpush1.msra.mxu0 0.0
    %160 = vmatprep.subr.mxu0 0.0
    %161 = vmatpush1.msra.mxu0 0.0
    %162 = vmatprep.subr.mxu0 0.0
    %163 = vmatpush1.msra.mxu0 0.0
    %164 = vmatprep.subr.mxu0 0.0
    %165 = vmatpush1.msra.mxu0 0.0
    %166 = vmatprep.subr.mxu0 0.0
    %167 = vmatpush1.msra.mxu0 0.0
    %168 = vmatprep.subr.mxu0 0.0
    %169 = vmatpush1.msra.mxu0 0.0
    %170 = vmatprep.subr.mxu0 0.0
    %171 = vmatpush1.msra.mxu0 0.0
    %172 = vmatprep.subr.mxu0 0.0
    %173 = vmatpush1.msra.mxu0 0.0
    %174 = vmatprep.subr.mxu0 0.0
    %175 = vmatpush1.msra.mxu0 0.0
    %176 = vmatprep.subr.mxu0 0.0
    %177 = vmatpush1.msra.mxu0 0.0
    %178 = vmatprep.subr.mxu0 0.0
    %179 = vmatpush1.msra.mxu0 0.0
    %180 = vmatprep.subr.mxu0 0.0
    %181 = vmatpush1.msra.mxu0 0.0
    %182 = vmatprep.subr.mxu0 0.0
    %183 = vmatpush1.msra.mxu0 0.0
    %184 = vmatprep.subr.mxu0 0.0
    %185 = vmatpush1.msra.mxu0 0.0
    %186 = vmatprep.subr.mxu0 0.0
    %187 = vmatpush1.msra.mxu0 0.0
    %188 = vmatprep.subr.mxu0 0.0
    %189 = vmatpush1.msra.mxu0 0.0
    %190 = vmatprep.subr.mxu0 0.0
    %191 = vmatpush1.msra.mxu0 0.0
    %192 = vmatprep.subr.mxu0 0.0
    %193 = vmatpush1.msra.mxu0 0.0
    %194 = vmatprep.subr.mxu0 0.0
    %195 = vmatpush1.msra.mxu0 0.0
    %196 = vmatprep.subr.mxu0 0.0
    %197 = vmatpush1.msra.mxu0 0.0
    %198 = vmatprep.subr.mxu0 0.0
    %199 = vmatpush1.msra.mxu0 0.0
    %200 = vmatprep.subr.mxu0 0.0
    %201 = vmatpush1.msra.mxu0 0.0
    %202 = vmatprep.subr.mxu0 0.0
    %203 = vmatpush1.msra.mxu0 0.0
    %204 = vmatprep.subr.mxu0 0.0
    %205 = vmatpush1.msra.mxu0 0.0
    %206 = vmatprep.subr.mxu0 0.0
    %207 = vmatpush1.msra.mxu0 0.0
    %208 = vmatprep.subr.mxu0 0.0
    %209 = vmatpush1.msra.mxu0 0.0
    %210 = vmatprep.mubr.f32.mxu0 0.0
    %211 = vmatmul.mubr.f32.gmra.mrb[0].mxu0 %v144
    %v212 = vpop.f32.mrb[0].mxu0
    %v213 = vadd.f32 %v140, %v212
    %v214 = vpop.f32.mrb[0].mxu0
    %215 = vdwg.mxu0
    %v216 = vtanh.pop %v213
    %v217 = vld [vmem:[%s5] sm:$0xff]
    %219 = vset.pattern.permute.xlu0 0
    %220 = vperm.xlu0 %219, %v217
    %v221 = vpop.permute.xlu0 %220
    %v223 = vmul.f32 %v221, %v216
    %v224 = vsel %vm142, %v223, 0.0
    %v225 = vrot.slane %v224, 4
    %v226 = vadd.f32 %v224, %v225
    %v227 = vrot.slane %v226, 2
    %v228 = vadd.f32 %v226, %v227
    %v229 = vrot.slane %v228, 1
    %v230 = vadd.f32 %v228, %v229
    %v231 = vld [vmem:[#allocation2] sm:$0x1]
    %233 = vset.pattern.permute.xlu0 0
    %234 = vperm.xlu0 %233, %v231
    %v235 = vpop.permute.xlu0 %234
    %v237 = vlaneseq
    %v238 = vshrl.u32 %v237, 7
    %v239 = vsub.s32 0, %v238
    %v240 = vrot.slane %v235, %v239
    %v241 = vadd.f32 %v230, %v240
    %vm242 = vcmask 122880
    %243 = vst.msk [vmem:[#allocation3] sm:$0x1] %vm242, %v241
    // Predicated region
    $region30: #{value_network_forward.1} parent=1 // pred_check
      _
    $region31: #{value_network_forward.1} parent=1 // pred_check_branch
      %245 = sbr.rel (0) target = $region33
    $region32: #{value_network_forward.1} parent=1 // pred_region
      %s247 = ssub.s32 16, 16
      %248 = vsyncadd [#allocation4], %s247
      %s250 = sshll.u32 [#allocation3], 4
      %s251 = int_to_ptr.vmem [resolvable:$true] %s250
      %253 = dma.vmem_to_hbm [thread:$0]  %s251, 16, %s7, [#allocation4]
    $region33: #{value_network_forward.1} parent=1 // pred_fallthru
      _
    // Predicated region
    $region34: #{value_network_forward.1} parent=1 // pred_check
      _
    $region35: #{value_network_forward.1} parent=1 // pred_check_branch
      %255 = sbr.rel (0) target = $region37
    $region36: #{value_network_forward.1} parent=1 // pred_region
      %256 = dma.done [#allocation4], 16
    $region37: #{value_network_forward.1} parent=1 // pred_fallthru
      _
    %257 = vsyncpa [#allocation4], 1

</llo_original>
